<compile_context>
chip_gen: v5e
topology: v5e:2x2
jax: 0.10.0
libtpu: 0.0.40
codegen_flags: <defaults>
</compile_context>

<pallas_src>
import math

import jax
import jax.numpy as jnp
from jax.experimental import pallas as pl
from jax.experimental.pallas import tpu as pltpu


_ROW_ALIGN = 16  # bf16 input tile: keep row-tiles a multiple of the sublane packing


def _gelu_tanh(x):
    # tanh-approximate GELU: the transcendental goes to the EUP slot instead of
    # a long erf polynomial on the 4-wide VALU (the pre-fix binding unit on
    # v6e/v7x).  Documented approximation vs torch's default erf GELU (~1e-3).
    c = 0.7978845608028654  # sqrt(2/pi)
    return 0.5 * x * (1.0 + jnp.tanh(c * (x + 0.044715 * x * x * x)))


def _round_up(v, m):
    return ((v + m - 1) // m) * m


def _detection_kernel(
    x_ref,                    # (tm, H) patch-embedding tile (bf16)
    lnw_ref, lnb_ref,         # (1, H) layernorm weight / bias (f32)
    w0_ref, b0_ref,           # fused dense0: (H, 2H) bf16, (1, 2H) f32  [box | class]
    bw1_ref, bb1_ref,         # box   dense1: (H, H) bf16, (1, H) f32
    cw1_ref, cb1_ref,         # class dense1: (H, H) bf16, (1, H) f32
    woutb_ref, woutc_ref,     # output proj halves: (H, OUT_PAD) bf16 each
    bout_ref,                 # fused output bias: (1, OUT_PAD) f32
    out_ref,                  # (tm, OUT_PAD) f32: cols [0:4]=sigmoid boxes, [4:4+C+1]=logits
):
    H = w0_ref.shape[0]
    mm_dtype = w0_ref.dtype

    x = x_ref[...].astype(jnp.float32)

    # --- LayerNorm over hidden axis (eps matches torch default 1e-5) ---
    mu = jnp.mean(x, axis=-1, keepdims=True)
    xc = x - mu
    var = jnp.mean(xc * xc, axis=-1, keepdims=True)
    xn = xc * jax.lax.rsqrt(var + 1e-5) * lnw_ref[...] + lnb_ref[...]

    # --- Fused dense0 for both heads: one (H, 2H) matmul from xn ---
    h01 = jnp.dot(xn.astype(mm_dtype), w0_ref[...],
                  preferred_element_type=jnp.float32) + b0_ref[...]
    h01 = _gelu_tanh(h01)
    hb = h01[:, :H]       # box-head hidden
    hc = h01[:, H:]       # class-head hidden

    # --- dense1 per head (HxH, bf16 in / f32 acc) — kept separate (v5e MXU floor) ---
    hb = _gelu_tanh(jnp.dot(hb.astype(mm_dtype), bw1_ref[...],
                            preferred_element_type=jnp.float32) + bb1_ref[...])
    hc = _gelu_tanh(jnp.dot(hc.astype(mm_dtype), cw1_ref[...],
                            preferred_element_type=jnp.float32) + cb1_ref[...])

    # --- Lane-padded output projection: two (H, OUT_PAD) matmuls, no concat ---
    raw = (jnp.dot(hb.astype(mm_dtype), woutb_ref[...],
                   preferred_element_type=jnp.float32)
           + jnp.dot(hc.astype(mm_dtype), woutc_ref[...],
                     preferred_element_type=jnp.float32)
           + bout_ref[...])

    # sigmoid only on the 4 box columns; logits (and zero padding) pass through
    col = jax.lax.broadcasted_iota(jnp.int32, raw.shape, 1)
    out_ref[...] = jnp.where(col < 4, jax.nn.sigmoid(raw), raw).astype(out_ref.dtype)


def pack_params(params, matmul_dtype=jnp.bfloat16):
    """Pack per-layer torch-style params into the fused / padded kernel weights.

    Call ONCE (outside the hot loop).  HxH / output matmul weights are stored
    in `matmul_dtype` (bf16) for the MXU fast path; biases, layernorm params
    and all accumulation stay f32.
    """
    H = params["bw0"].shape[0]
    Cp1 = params["cw2"].shape[1]
    out_dim = 4 + Cp1
    out_pad = max(128, _round_up(out_dim, 128))   # lane-dense output slab

    w0 = jnp.concatenate([params["bw0"], params["cw0"]], axis=1).astype(matmul_dtype)
    b0 = jnp.concatenate([params["bb0"], params["cb0"]], axis=1).astype(jnp.float32)

    # output projection split into two (H, OUT_PAD) halves (box cols [0,4),
    # class cols [4, 4+Cp1)); zero-padded to 128 lanes for an unmasked store.
    wout_b = jnp.zeros((H, out_pad), jnp.float32).at[:, 0:4].set(params["bw2"])
    wout_c = jnp.zeros((H, out_pad), jnp.float32).at[:, 4:4 + Cp1].set(params["cw2"])
    bout = jnp.zeros((1, out_pad), jnp.float32)
    bout = bout.at[0, 0:4].set(params["bb2"][0])
    bout = bout.at[0, 4:4 + Cp1].set(params["cb2"][0])

    return dict(
        ln_w=params["ln_w"].astype(jnp.float32),
        ln_b=params["ln_b"].astype(jnp.float32),
        w0=w0, b0=b0,
        bw1=params["bw1"].astype(matmul_dtype), bb1=params["bb1"].astype(jnp.float32),
        cw1=params["cw1"].astype(matmul_dtype), cb1=params["cb1"].astype(jnp.float32),
        wout_b=wout_b.astype(matmul_dtype), wout_c=wout_c.astype(matmul_dtype),
        bout=bout,
    )


def siglip_detection_forward(patch_embeddings, packed, num_classes, *, tm=256,
                             vmem_limit_bytes=None):
    """patch_embeddings: (B, N, H) float32. `packed` from pack_params().
    Returns dict of pred_boxes (B,N,4) and pred_logits (B,N,num_classes+1)."""
    B, N, H = patch_embeddings.shape
    M = B * N
    Cp1 = num_classes + 1
    out_pad = packed["wout_b"].shape[1]

    # --- row tile: as large as possible, multiple of 16 (bf16 sublane packing),
    # and when M allows, shrunk so the 1-D "parallel" grid has an even number
    # of steps >= 2 (both v7x TensorCores get work).
    tm_eff = min(tm, _round_up(M, _ROW_ALIGN))
    n_steps = -(-M // tm_eff)
    if M > _ROW_ALIGN and n_steps % 2 == 1:
        target_steps = n_steps + 1 if n_steps > 1 else 2
        tm_eff = max(_ROW_ALIGN,
                     min(tm_eff, _round_up(-(-M // target_steps), _ROW_ALIGN)))
    M_pad = _round_up(M, tm_eff)
    grid = (M_pad // tm_eff,)

    # bf16 input halves x-tile VMEM + HBM read traffic; LN stats stay f32 in-kernel.
    x2d = patch_embeddings.reshape(M, H).astype(jnp.bfloat16)
    if M_pad != M:
        # zero-fill tail rows so the last tile never computes on garbage
        x2d = jnp.pad(x2d, ((0, M_pad - M), (0, 0)))

    weight_names = ("ln_w", "ln_b", "w0", "b0", "bw1", "bb1", "cw1", "cb1",
                    "wout_b", "wout_c", "bout")
    weight_bytes = sum(int(packed[k].nbytes) for k in weight_names)

    # ---- cost estimate (advisory) ----
    flops = 2 * M_pad * H * (2 * H) + 2 * (2 * M_pad * H * H) + 2 * (2 * M_pad * H * out_pad)
    transcendentals = 4 * M_pad * H + M_pad * out_pad
    bytes_accessed = int(x2d.nbytes) + M_pad * out_pad * 4 + weight_bytes
    cost = pl.CostEstimate(flops=int(flops), transcendentals=int(transcendentals),
                           bytes_accessed=int(bytes_accessed))

    # ---- VMEM budget: resident weights (once) + double-buffered I/O tiles +
    # headroom for compiler-managed intermediates; clamped below device VMEM
    # (64 MiB/TC on v7x, 128 MiB on v5e/v6e) minus safety margin.
    if vmem_limit_bytes is None:
        io_bytes = 2 * (tm_eff * H * 2) + 2 * (tm_eff * out_pad * 4)
        needed = weight_bytes + io_bytes + (24 << 20)
        try:
            device_vmem = int(pltpu.get_tpu_info().vmem_capacity_bytes)
        except Exception:
            # hardware-query fallback only (never masks kernel errors); assume
            # the smallest per-TC VMEM in the fleet (v7x).
            device_vmem = 64 << 20
        vmem_limit_bytes = int(max(16 << 20, min(needed, device_vmem - (8 << 20))))

    # weights/biases: whole-array, VMEM-resident, outside the pipeline (single copy)
    resident = pl.BlockSpec(memory_space=pltpu.MemorySpace.VMEM)
    in_specs = [pl.BlockSpec((tm_eff, H), lambda i: (i, 0))] + [resident] * 11
    out_specs = pl.BlockSpec((tm_eff, out_pad), lambda i: (i, 0))

    out2d = pl.pallas_call(
        _detection_kernel,
        out_shape=jax.ShapeDtypeStruct((M_pad, out_pad), jnp.float32),
        grid_spec=pltpu.PrefetchScalarGridSpec(
            num_scalar_prefetch=0,
            grid=grid,
            in_specs=in_specs,
            out_specs=out_specs,
        ),
        compiler_params=pltpu.CompilerParams(
            dimension_semantics=("parallel",),
            vmem_limit_bytes=vmem_limit_bytes,
        ),
        cost_estimate=cost,
    )(
        x2d,
        packed["ln_w"], packed["ln_b"],
        packed["w0"], packed["b0"],
        packed["bw1"], packed["bb1"],
        packed["cw1"], packed["cb1"],
        packed["wout_b"], packed["wout_c"], packed["bout"],
    )

    return {
        "pred_boxes": out2d[:M, :4].reshape(B, N, 4),
        "pred_logits": out2d[:M, 4:4 + Cp1].reshape(B, N, Cp1),
    }


def init_params(key, hidden_size, num_classes):
    """Deterministic synthetic init.  Linear weights stored already transposed to
    (in_features, out_features) so the kernel does x @ W; biases as (1, out)."""
    H = hidden_size
    Cp1 = num_classes + 1
    keys = jax.random.split(key, 6)

    def lin(k, fan_in, fan_out):
        kw, kb = jax.random.split(k)
        bound = 1.0 / math.sqrt(fan_in)
        w = jax.random.uniform(kw, (fan_in, fan_out), jnp.float32, -bound, bound)
        b = jax.random.uniform(kb, (1, fan_out), jnp.float32, -bound, bound)
        return w, b

    bw0, bb0 = lin(keys[0], H, H)
    bw1, bb1 = lin(keys[1], H, H)
    bw2, bb2 = lin(keys[2], H, 4)
    cw0, cb0 = lin(keys[3], H, H)
    cw1, cb1 = lin(keys[4], H, H)
    cw2, cb2 = lin(keys[5], H, Cp1)
    ln_w = jnp.ones((1, H), jnp.float32)   # nn.LayerNorm default init
    ln_b = jnp.zeros((1, H), jnp.float32)
    return dict(
        ln_w=ln_w, ln_b=ln_b,
        bw0=bw0, bb0=bb0, bw1=bw1, bb1=bb1, bw2=bw2, bb2=bb2,
        cw0=cw0, cb0=cb0, cw1=cw1, cb1=cb1, cw2=cw2, cb2=cb2,
    )


def _reference_forward(x, p):
    """Pure-JAX f32 reference matching the PyTorch module (erf GELU)."""
    mu = jnp.mean(x, axis=-1, keepdims=True)
    var = jnp.mean((x - mu) ** 2, axis=-1, keepdims=True)
    xn = (x - mu) / jnp.sqrt(var + 1e-5) * p["ln_w"][0] + p["ln_b"][0]
    g = lambda v: 0.5 * v * (1.0 + jax.lax.erf(v * 0.7071067811865476))
    h = g(xn @ p["bw0"] + p["bb0"][0])
    h = g(h @ p["bw1"] + p["bb1"][0])
    boxes = jax.nn.sigmoid(h @ p["bw2"] + p["bb2"][0])
    c = g(xn @ p["cw0"] + p["cb0"][0])
    c = g(c @ p["cw1"] + p["cb1"][0])
    logits = c @ p["cw2"] + p["cb2"][0]
    return boxes, logits


if __name__ == "__main__":
    B, N, H, num_classes = 2, 8, 32, 3
    key = jax.random.PRNGKey(0)
    k_x, k_p = jax.random.split(key)
    x = jax.random.normal(k_x, (B, N, H), jnp.float32)
    params = init_params(k_p, H, num_classes)

    packed = pack_params(params, matmul_dtype=jnp.bfloat16)
    out = siglip_detection_forward(x, packed, num_classes, tm=256)
    jax.block_until_ready(out)

    ref_boxes, ref_logits = _reference_forward(x, params)

    assert out["pred_boxes"].shape == (B, N, 4)
    assert out["pred_logits"].shape == (B, N, num_classes + 1)
    # bf16 MXU inputs/activations (f32 accumulation) + tanh-GELU approximation
    # vs the f32 erf reference -> looser tolerance than pure f32.
    assert jnp.allclose(out["pred_boxes"], ref_boxes, atol=3e-2, rtol=3e-2)
    assert jnp.allclose(out["pred_logits"], ref_logits, atol=3e-2, rtol=3e-2)
    print("KERNEL_OK")
</pallas_src>

<mosaic_0001>
module attributes {stable_mosaic.version = 11 : i64} {
  func.func @_detection_kernel(%arg0: i32, %arg1: memref<16x32xbf16, #tpu.memory_space<vmem>>, %arg2: memref<1x32xf32, #tpu.memory_space<vmem>>, %arg3: memref<1x32xf32, #tpu.memory_space<vmem>>, %arg4: memref<32x64xbf16, #tpu.memory_space<vmem>>, %arg5: memref<1x64xf32, #tpu.memory_space<vmem>>, %arg6: memref<32x32xbf16, #tpu.memory_space<vmem>>, %arg7: memref<1x32xf32, #tpu.memory_space<vmem>>, %arg8: memref<32x32xbf16, #tpu.memory_space<vmem>>, %arg9: memref<1x32xf32, #tpu.memory_space<vmem>>, %arg10: memref<32x128xbf16, #tpu.memory_space<vmem>>, %arg11: memref<32x128xbf16, #tpu.memory_space<vmem>>, %arg12: memref<1x128xf32, #tpu.memory_space<vmem>>, %arg13: memref<16x128xf32, #tpu.memory_space<vmem>>) attributes {dimension_semantics = [#tpu.dimension_semantics<parallel>], iteration_bounds = array<i64: 1>, scalar_prefetch = 0 : i64, scratch_operands = 0 : i64, tpu.core_type = #tpu.core_type<tc>, window_params = [{transform_indices = @transform_0, window_bounds = array<i64: 16, 32>}, {pipeline_mode = #tpu.pipeline_mode<synchronous>, transform_indices = @transform_1, window_bounds = array<i64: 1, 32>}, {pipeline_mode = #tpu.pipeline_mode<synchronous>, transform_indices = @transform_2, window_bounds = array<i64: 1, 32>}, {pipeline_mode = #tpu.pipeline_mode<synchronous>, transform_indices = @transform_3, window_bounds = array<i64: 32, 64>}, {pipeline_mode = #tpu.pipeline_mode<synchronous>, transform_indices = @transform_4, window_bounds = array<i64: 1, 64>}, {pipeline_mode = #tpu.pipeline_mode<synchronous>, transform_indices = @transform_5, window_bounds = array<i64: 32, 32>}, {pipeline_mode = #tpu.pipeline_mode<synchronous>, transform_indices = @transform_6, window_bounds = array<i64: 1, 32>}, {pipeline_mode = #tpu.pipeline_mode<synchronous>, transform_indices = @transform_7, window_bounds = array<i64: 32, 32>}, {pipeline_mode = #tpu.pipeline_mode<synchronous>, transform_indices = @transform_8, window_bounds = array<i64: 1, 32>}, {pipeline_mode = #tpu.pipeline_mode<synchronous>, transform_indices = @transform_9, window_bounds = array<i64: 32, 128>}, {pipeline_mode = #tpu.pipeline_mode<synchronous>, transform_indices = @transform_10, window_bounds = array<i64: 32, 128>}, {pipeline_mode = #tpu.pipeline_mode<synchronous>, transform_indices = @transform_11, window_bounds = array<i64: 1, 128>}, {transform_indices = @transform_12, window_bounds = array<i64: 16, 128>}]} {
    %c0 = arith.constant 0 : index
    %c0_0 = arith.constant 0 : index
    %0 = vector.load %arg1[%c0, %c0_0] : memref<16x32xbf16, #tpu.memory_space<vmem>>, vector<16x32xbf16>
    %1 = arith.extf %0 : vector<16x32xbf16> to vector<16x32xf32>
    %cst = arith.constant dense<0.000000e+00> : vector<16xf32>
    %2 = vector.multi_reduction <add>, %1, %cst [1] : vector<16x32xf32> to vector<16xf32>
    %3 = vector.shape_cast %2 : vector<16xf32> to vector<16x1xf32>
    %cst_1 = arith.constant 3.200000e+01 : f32
    %4 = vector.broadcast %cst_1 : f32 to vector<16x1xf32>
    %5 = arith.divf %3, %4 : vector<16x1xf32>
    %6 = vector.broadcast %5 : vector<16x1xf32> to vector<16x32xf32>
    %7 = arith.subf %1, %6 : vector<16x32xf32>
    %8 = arith.mulf %7, %7 : vector<16x32xf32>
    %cst_2 = arith.constant dense<0.000000e+00> : vector<16xf32>
    %9 = vector.multi_reduction <add>, %8, %cst_2 [1] : vector<16x32xf32> to vector<16xf32>
    %10 = vector.shape_cast %9 : vector<16xf32> to vector<16x1xf32>
    %cst_3 = arith.constant 3.200000e+01 : f32
    %11 = vector.broadcast %cst_3 : f32 to vector<16x1xf32>
    %12 = arith.divf %10, %11 : vector<16x1xf32>
    %cst_4 = arith.constant 9.99999974E-6 : f32
    %13 = vector.broadcast %cst_4 : f32 to vector<16x1xf32>
    %14 = arith.addf %12, %13 : vector<16x1xf32>
    %15 = math.rsqrt %14 : vector<16x1xf32>
    %16 = vector.broadcast %15 : vector<16x1xf32> to vector<16x32xf32>
    %17 = arith.mulf %7, %16 : vector<16x32xf32>
    %c0_5 = arith.constant 0 : index
    %c0_6 = arith.constant 0 : index
    %18 = vector.load %arg2[%c0_5, %c0_6] : memref<1x32xf32, #tpu.memory_space<vmem>>, vector<1x32xf32>
    %19 = vector.broadcast %18 : vector<1x32xf32> to vector<16x32xf32>
    %20 = arith.mulf %17, %19 : vector<16x32xf32>
    %c0_7 = arith.constant 0 : index
    %c0_8 = arith.constant 0 : index
    %21 = vector.load %arg3[%c0_7, %c0_8] : memref<1x32xf32, #tpu.memory_space<vmem>>, vector<1x32xf32>
    %22 = vector.broadcast %21 : vector<1x32xf32> to vector<16x32xf32>
    %23 = arith.addf %20, %22 : vector<16x32xf32>
    %24 = arith.truncf %23 : vector<16x32xf32> to vector<16x32xbf16>
    %c0_9 = arith.constant 0 : index
    %c0_10 = arith.constant 0 : index
    %25 = vector.load %arg4[%c0_9, %c0_10] : memref<32x64xbf16, #tpu.memory_space<vmem>>, vector<32x64xbf16>
    %cst_11 = arith.constant dense<0.000000e+00> : vector<16x64xf32>
    %26 = tpu.matmul %24, %25, %cst_11 {dimension_numbers = #tpu.dot_dimension_numbers<[1], [0], [0], [1], [0, 0, 1, 1], [], []>} : vector<16x32xbf16>, vector<32x64xbf16>, vector<16x64xf32> -> vector<16x64xf32>
    %c0_12 = arith.constant 0 : index
    %c0_13 = arith.constant 0 : index
    %27 = vector.load %arg5[%c0_12, %c0_13] : memref<1x64xf32, #tpu.memory_space<vmem>>, vector<1x64xf32>
    %28 = vector.broadcast %27 : vector<1x64xf32> to vector<16x64xf32>
    %29 = arith.addf %26, %28 : vector<16x64xf32>
    %cst_14 = arith.constant 5.000000e-01 : f32
    %30 = vector.broadcast %cst_14 : f32 to vector<16x64xf32>
    %31 = arith.mulf %30, %29 : vector<16x64xf32>
    %cst_15 = arith.constant 4.471500e-02 : f32
    %32 = vector.broadcast %cst_15 : f32 to vector<16x64xf32>
    %33 = arith.mulf %32, %29 : vector<16x64xf32>
    %34 = arith.mulf %33, %29 : vector<16x64xf32>
    %35 = arith.mulf %34, %29 : vector<16x64xf32>
    %36 = arith.addf %29, %35 : vector<16x64xf32>
    %cst_16 = arith.constant 0.797884583 : f32
    %37 = vector.broadcast %cst_16 : f32 to vector<16x64xf32>
    %38 = arith.mulf %37, %36 : vector<16x64xf32>
    %39 = math.tanh %38 : vector<16x64xf32>
    %cst_17 = arith.constant 1.000000e+00 : f32
    %40 = vector.broadcast %cst_17 : f32 to vector<16x64xf32>
    %41 = arith.addf %40, %39 : vector<16x64xf32>
    %42 = arith.mulf %31, %41 : vector<16x64xf32>
    %43 = vector.extract_strided_slice %42 {offsets = [0, 0], sizes = [16, 32], strides = [1, 1]} : vector<16x64xf32> to vector<16x32xf32>
    %44 = vector.extract_strided_slice %42 {offsets = [0, 32], sizes = [16, 32], strides = [1, 1]} : vector<16x64xf32> to vector<16x32xf32>
    %45 = arith.truncf %43 : vector<16x32xf32> to vector<16x32xbf16>
    %c0_18 = arith.constant 0 : index
    %c0_19 = arith.constant 0 : index
    %46 = vector.load %arg6[%c0_18, %c0_19] : memref<32x32xbf16, #tpu.memory_space<vmem>>, vector<32x32xbf16>
    %cst_20 = arith.constant dense<0.000000e+00> : vector<16x32xf32>
    %47 = tpu.matmul %45, %46, %cst_20 {dimension_numbers = #tpu.dot_dimension_numbers<[1], [0], [0], [1], [0, 0, 1, 1], [], []>} : vector<16x32xbf16>, vector<32x32xbf16>, vector<16x32xf32> -> vector<16x32xf32>
    %c0_21 = arith.constant 0 : index
    %c0_22 = arith.constant 0 : index
    %48 = vector.load %arg7[%c0_21, %c0_22] : memref<1x32xf32, #tpu.memory_space<vmem>>, vector<1x32xf32>
    %49 = vector.broadcast %48 : vector<1x32xf32> to vector<16x32xf32>
    %50 = arith.addf %47, %49 : vector<16x32xf32>
    %cst_23 = arith.constant 5.000000e-01 : f32
    %51 = vector.broadcast %cst_23 : f32 to vector<16x32xf32>
    %52 = arith.mulf %51, %50 : vector<16x32xf32>
    %cst_24 = arith.constant 4.471500e-02 : f32
    %53 = vector.broadcast %cst_24 : f32 to vector<16x32xf32>
    %54 = arith.mulf %53, %50 : vector<16x32xf32>
    %55 = arith.mulf %54, %50 : vector<16x32xf32>
    %56 = arith.mulf %55, %50 : vector<16x32xf32>
    %57 = arith.addf %50, %56 : vector<16x32xf32>
    %cst_25 = arith.constant 0.797884583 : f32
    %58 = vector.broadcast %cst_25 : f32 to vector<16x32xf32>
    %59 = arith.mulf %58, %57 : vector<16x32xf32>
    %60 = math.tanh %59 : vector<16x32xf32>
    %cst_26 = arith.constant 1.000000e+00 : f32
    %61 = vector.broadcast %cst_26 : f32 to vector<16x32xf32>
    %62 = arith.addf %61, %60 : vector<16x32xf32>
    %63 = arith.mulf %52, %62 : vector<16x32xf32>
    %64 = arith.truncf %44 : vector<16x32xf32> to vector<16x32xbf16>
    %c0_27 = arith.constant 0 : index
    %c0_28 = arith.constant 0 : index
    %65 = vector.load %arg8[%c0_27, %c0_28] : memref<32x32xbf16, #tpu.memory_space<vmem>>, vector<32x32xbf16>
    %cst_29 = arith.constant dense<0.000000e+00> : vector<16x32xf32>
    %66 = tpu.matmul %64, %65, %cst_29 {dimension_numbers = #tpu.dot_dimension_numbers<[1], [0], [0], [1], [0, 0, 1, 1], [], []>} : vector<16x32xbf16>, vector<32x32xbf16>, vector<16x32xf32> -> vector<16x32xf32>
    %c0_30 = arith.constant 0 : index
    %c0_31 = arith.constant 0 : index
    %67 = vector.load %arg9[%c0_30, %c0_31] : memref<1x32xf32, #tpu.memory_space<vmem>>, vector<1x32xf32>
    %68 = vector.broadcast %67 : vector<1x32xf32> to vector<16x32xf32>
    %69 = arith.addf %66, %68 : vector<16x32xf32>
    %cst_32 = arith.constant 5.000000e-01 : f32
    %70 = vector.broadcast %cst_32 : f32 to vector<16x32xf32>
    %71 = arith.mulf %70, %69 : vector<16x32xf32>
    %cst_33 = arith.constant 4.471500e-02 : f32
    %72 = vector.broadcast %cst_33 : f32 to vector<16x32xf32>
    %73 = arith.mulf %72, %69 : vector<16x32xf32>
    %74 = arith.mulf %73, %69 : vector<16x32xf32>
    %75 = arith.mulf %74, %69 : vector<16x32xf32>
    %76 = arith.addf %69, %75 : vector<16x32xf32>
    %cst_34 = arith.constant 0.797884583 : f32
    %77 = vector.broadcast %cst_34 : f32 to vector<16x32xf32>
    %78 = arith.mulf %77, %76 : vector<16x32xf32>
    %79 = math.tanh %78 : vector<16x32xf32>
    %cst_35 = arith.constant 1.000000e+00 : f32
    %80 = vector.broadcast %cst_35 : f32 to vector<16x32xf32>
    %81 = arith.addf %80, %79 : vector<16x32xf32>
    %82 = arith.mulf %71, %81 : vector<16x32xf32>
    %83 = arith.truncf %63 : vector<16x32xf32> to vector<16x32xbf16>
    %c0_36 = arith.constant 0 : index
    %c0_37 = arith.constant 0 : index
    %84 = vector.load %arg10[%c0_36, %c0_37] : memref<32x128xbf16, #tpu.memory_space<vmem>>, vector<32x128xbf16>
    %cst_38 = arith.constant dense<0.000000e+00> : vector<16x128xf32>
    %85 = tpu.matmul %83, %84, %cst_38 {dimension_numbers = #tpu.dot_dimension_numbers<[1], [0], [0], [1], [0, 0, 1, 1], [], []>} : vector<16x32xbf16>, vector<32x128xbf16>, vector<16x128xf32> -> vector<16x128xf32>
    %86 = arith.truncf %82 : vector<16x32xf32> to vector<16x32xbf16>
    %c0_39 = arith.constant 0 : index
    %c0_40 = arith.constant 0 : index
    %87 = vector.load %arg11[%c0_39, %c0_40] : memref<32x128xbf16, #tpu.memory_space<vmem>>, vector<32x128xbf16>
    %cst_41 = arith.constant dense<0.000000e+00> : vector<16x128xf32>
    %88 = tpu.matmul %86, %87, %cst_41 {dimension_numbers = #tpu.dot_dimension_numbers<[1], [0], [0], [1], [0, 0, 1, 1], [], []>} : vector<16x32xbf16>, vector<32x128xbf16>, vector<16x128xf32> -> vector<16x128xf32>
    %89 = arith.addf %85, %88 : vector<16x128xf32>
    %c0_42 = arith.constant 0 : index
    %c0_43 = arith.constant 0 : index
    %90 = vector.load %arg12[%c0_42, %c0_43] : memref<1x128xf32, #tpu.memory_space<vmem>>, vector<1x128xf32>
    %91 = vector.broadcast %90 : vector<1x128xf32> to vector<16x128xf32>
    %92 = arith.addf %89, %91 : vector<16x128xf32>
    %93 = tpu.iota {dimensions = array<i32: 1>} : vector<16x128xi32>
    %c4_i32 = arith.constant 4 : i32
    %94 = vector.broadcast %c4_i32 : i32 to vector<16x128xi32>
    %95 = arith.cmpi slt, %93, %94 : vector<16x128xi32>
    %96 = arith.negf %92 : vector<16x128xf32>
    %97 = math.exp %96 : vector<16x128xf32>
    %cst_44 = arith.constant 1.000000e+00 : f32
    %98 = vector.broadcast %cst_44 : f32 to vector<16x128xf32>
    %99 = arith.addf %98, %97 : vector<16x128xf32>
    %100 = arith.divf %98, %99 : vector<16x128xf32>
    %101 = arith.select %95, %100, %92 : vector<16x128xi1>, vector<16x128xf32>
    %c0_45 = arith.constant 0 : index
    %c0_46 = arith.constant 0 : index
    %102 = vector.load %arg13[%c0_45, %c0_46] : memref<16x128xf32, #tpu.memory_space<vmem>>, vector<16x128xf32>
    tpu.vector_store %arg13[%c0_45, %c0_46], %101 {strides = array<i32>} : memref<16x128xf32, #tpu.memory_space<vmem>>, vector<16x128xf32>,
    return
  }
  func.func @transform_0(%arg0: i32) -> (i32, i32) {
    %c0_i32 = arith.constant 0 : i32
    %c0_i32_0 = arith.constant 0 : i32
    return %arg0, %c0_i32 : i32, i32
  }
  func.func @transform_1(%arg0: i32) -> (i32, i32) {
    %c0_i32 = arith.constant 0 : i32
    %c0_i32_0 = arith.constant 0 : i32
    %c0_i32_1 = arith.constant 0 : i32
    return %c0_i32, %c0_i32_0 : i32, i32
  }
  func.func @transform_2(%arg0: i32) -> (i32, i32) {
    %c0_i32 = arith.constant 0 : i32
    %c0_i32_0 = arith.constant 0 : i32
    %c0_i32_1 = arith.constant 0 : i32
    return %c0_i32, %c0_i32_0 : i32, i32
  }
  func.func @transform_3(%arg0: i32) -> (i32, i32) {
    %c0_i32 = arith.constant 0 : i32
    %c0_i32_0 = arith.constant 0 : i32
    %c0_i32_1 = arith.constant 0 : i32
    return %c0_i32, %c0_i32_0 : i32, i32
  }
  func.func @transform_4(%arg0: i32) -> (i32, i32) {
    %c0_i32 = arith.constant 0 : i32
    %c0_i32_0 = arith.constant 0 : i32
    %c0_i32_1 = arith.constant 0 : i32
    return %c0_i32, %c0_i32_0 : i32, i32
  }
  func.func @transform_5(%arg0: i32) -> (i32, i32) {
    %c0_i32 = arith.constant 0 : i32
    %c0_i32_0 = arith.constant 0 : i32
    %c0_i32_1 = arith.constant 0 : i32
    return %c0_i32, %c0_i32_0 : i32, i32
  }
  func.func @transform_6(%arg0: i32) -> (i32, i32) {
    %c0_i32 = arith.constant 0 : i32
    %c0_i32_0 = arith.constant 0 : i32
    %c0_i32_1 = arith.constant 0 : i32
    return %c0_i32, %c0_i32_0 : i32, i32
  }
  func.func @transform_7(%arg0: i32) -> (i32, i32) {
    %c0_i32 = arith.constant 0 : i32
    %c0_i32_0 = arith.constant 0 : i32
    %c0_i32_1 = arith.constant 0 : i32
    return %c0_i32, %c0_i32_0 : i32, i32
  }
  func.func @transform_8(%arg0: i32) -> (i32, i32) {
    %c0_i32 = arith.constant 0 : i32
    %c0_i32_0 = arith.constant 0 : i32
    %c0_i32_1 = arith.constant 0 : i32
    return %c0_i32, %c0_i32_0 : i32, i32
  }
  func.func @transform_9(%arg0: i32) -> (i32, i32) {
    %c0_i32 = arith.constant 0 : i32
    %c0_i32_0 = arith.constant 0 : i32
    %c0_i32_1 = arith.constant 0 : i32
    return %c0_i32, %c0_i32_0 : i32, i32
  }
  func.func @transform_10(%arg0: i32) -> (i32, i32) {
    %c0_i32 = arith.constant 0 : i32
    %c0_i32_0 = arith.constant 0 : i32
    %c0_i32_1 = arith.constant 0 : i32
    return %c0_i32, %c0_i32_0 : i32, i32
  }
  func.func @transform_11(%arg0: i32) -> (i32, i32) {
    %c0_i32 = arith.constant 0 : i32
    %c0_i32_0 = arith.constant 0 : i32
    %c0_i32_1 = arith.constant 0 : i32
    return %c0_i32, %c0_i32_0 : i32, i32
  }
  func.func @transform_12(%arg0: i32) -> (i32, i32) {
    %c0_i32 = arith.constant 0 : i32
    %c0_i32_0 = arith.constant 0 : i32
    return %arg0, %c0_i32 : i32, i32
  }
}

</mosaic_0001>

<llo_original>
// kernel: tpu_custom_call.1
$region0: #{tpu_custom_call.1}
  #allocation0 [shape = 'u32[]', space=smem, size = 0x4, offset = 0x4, fixed_abs, tag = 'smem constant byte address 0x4 - core index']
  #allocation1 [shape = 'u32[72,128]{1,0:T(1,128)}', space=vmem, size = 0x9000, scoped, tag = 'internal scratch']
  %s0 = inlined_call_operand.hbm [shape: bf16[16,32], index: 0, kind: input, shape index: {}]
  %s1 = inlined_call_operand.hbm [shape: f32[1,32], index: 1, kind: input, shape index: {}]
  %s2 = inlined_call_operand.vmem [shape: f32[1,32], index: 2, kind: input, shape index: {}]
  %s3 = inlined_call_operand.hbm [shape: bf16[32,64], index: 3, kind: input, shape index: {}]
  %s4 = inlined_call_operand.vmem [shape: f32[1,64], index: 4, kind: input, shape index: {}]
  %s5 = inlined_call_operand.hbm [shape: bf16[32,32], index: 5, kind: input, shape index: {}]
  %s6 = inlined_call_operand.vmem [shape: f32[1,32], index: 6, kind: input, shape index: {}]
  %s7 = inlined_call_operand.hbm [shape: bf16[32,32], index: 7, kind: input, shape index: {}]
  %s8 = inlined_call_operand.vmem [shape: f32[1,32], index: 8, kind: input, shape index: {}]
  %s9 = inlined_call_operand.hbm [shape: bf16[32,128], index: 9, kind: input, shape index: {}]
  %s10 = inlined_call_operand.hbm [shape: bf16[32,128], index: 10, kind: input, shape index: {}]
  %s11 = inlined_call_operand.vmem [shape: f32[1,128], index: 11, kind: input, shape index: {}]
  %s12 = inlined_call_operand.hbm [shape: f32[16,128], index: 12, kind: output, shape index: {}]
  %s13 = sld [smem:[#allocation0]]
  $region86: #{tpu_custom_call.1} parent=0
    _
  %s15 = ssub.s32 1, %s13
  %s16 = scalar_select 0, %s15, %s13
  $region1: #{tpu_custom_call.1} parent=0
    #allocation2 [shape = 'u8[4096]{0}', space=vmem, size = 0x1000, scoped, tag = 'input window, operand 0, single buffered']
    #allocation3 [shape = 's32[1]{0}', space=sflag, size = 0x4, scoped, tag = 'scoped memory for tpu_custom_call.1']
    #allocation4 [shape = 's32[1]{0}', space=sflag, size = 0x4, scoped, tag = 'scoped memory for tpu_custom_call.1']
    #allocation5 [shape = 'u8[512]{0}', space=vmem, size = 0x400, scoped, tag = 'input window, operand 1, single buffered']
    #allocation6 [shape = 's32[1]{0}', space=sflag, size = 0x4, scoped, tag = 'scoped memory for tpu_custom_call.1']
    #allocation7 [shape = 'u8[8192]{0}', space=vmem, size = 0x2000, scoped, tag = 'input window, operand 3, single buffered']
    #allocation8 [shape = 'u8[8192]{0}', space=vmem, size = 0x2000, scoped, tag = 'input window, operand 5, single buffered']
    #allocation9 [shape = 's32[1]{0}', space=sflag, size = 0x4, scoped, tag = 'scoped memory for tpu_custom_call.1']
    #allocation10 [shape = 'u8[8192]{0}', space=vmem, size = 0x2000, scoped, tag = 'input window, operand 7, single buffered']
    #allocation11 [shape = 'u8[8192]{0}', space=vmem, size = 0x2000, scoped, tag = 'input window, operand 9, single buffered']
    #allocation12 [shape = 's32[1]{0}', space=sflag, size = 0x4, scoped, tag = 'scoped memory for tpu_custom_call.1']
    #allocation13 [shape = 'u8[8192]{0}', space=vmem, size = 0x2000, scoped, tag = 'input window, operand 10, single buffered']
    #allocation14 [shape = 'u8[8192]{0}', space=vmem, size = 0x2000, scoped, tag = 'output window, operand 0, single buffered']
    %17 = vsyncpa [#allocation3], 0
    %18 = vsyncpa [#allocation6], 0
    %19 = vsyncpa [#allocation9], 0
    %20 = vsyncpa [#allocation12], 0
    %21 = vsyncpa [#allocation4], 0
    // Predicated region
    $region2: #{tpu_custom_call.1} parent=1 // pred_check
      _
    $region3: #{tpu_custom_call.1} parent=1 // pred_check_branch
      %23 = sbr.rel (0) target = $region5
    $region4: #{tpu_custom_call.1} parent=1 // pred_region
      %25 = vsyncadd [#allocation3], 0
      %s26 = sshll.u32 %s0, 4
      %s27 = int_to_ptr.hbm [resolvable:$true] %s26
      %s28 = sshll.u32 [#allocation2], 4
      %s29 = int_to_ptr.vmem [resolvable:$true] %s28
      %34 = dma.hbm_to_vmem [thread:$0]  %s27, 128, %s29, [#allocation3], 64, 64, 4
    $region5: #{tpu_custom_call.1} parent=1 // pred_fallthru
      _
    // Predicated region
    $region6: #{tpu_custom_call.1} parent=1 // pred_check
      _
    $region7: #{tpu_custom_call.1} parent=1 // pred_check_branch
      %36 = sbr.rel (0) target = $region9
    $region8: #{tpu_custom_call.1} parent=1 // pred_region
      %38 = vsyncadd [#allocation6], 0
      %s40 = sshll.u32 %s1, 4
      %s41 = int_to_ptr.hbm [resolvable:$true] %s40
      %s42 = sshll.u32 [#allocation5], 4
      %s43 = int_to_ptr.vmem [resolvable:$true] %s42
      %45 = dma.hbm_to_vmem [thread:$0]  %s41, 16, %s43, [#allocation6]
    $region9: #{tpu_custom_call.1} parent=1 // pred_fallthru
      _
    // Predicated region
    $region10: #{tpu_custom_call.1} parent=1 // pred_check
      _
    $region11: #{tpu_custom_call.1} parent=1 // pred_check_branch
      %47 = sbr.rel (0) target = $region13
    $region12: #{tpu_custom_call.1} parent=1 // pred_region
      _
    $region13: #{tpu_custom_call.1} parent=1 // pred_fallthru
      _
    // Predicated region
    $region14: #{tpu_custom_call.1} parent=1 // pred_check
      _
    $region15: #{tpu_custom_call.1} parent=1 // pred_check_branch
      %49 = sbr.rel (0) target = $region17
    $region16: #{tpu_custom_call.1} parent=1 // pred_region
      %51 = vsyncadd [#allocation6], 0
      %s52 = sshll.u32 %s3, 4
      %s53 = int_to_ptr.hbm [resolvable:$true] %s52
      %s54 = sshll.u32 [#allocation7], 4
      %s55 = int_to_ptr.vmem [resolvable:$true] %s54
      %60 = dma.hbm_to_vmem [thread:$0]  %s53, 256, %s55, [#allocation6], 64, 64, 4
    $region17: #{tpu_custom_call.1} parent=1 // pred_fallthru
      _
    // Predicated region
    $region18: #{tpu_custom_call.1} parent=1 // pred_check
      _
    $region19: #{tpu_custom_call.1} parent=1 // pred_check_branch
      %62 = sbr.rel (0) target = $region21
    $region20: #{tpu_custom_call.1} parent=1 // pred_region
      _
    $region21: #{tpu_custom_call.1} parent=1 // pred_fallthru
      _
    // Predicated region
    $region22: #{tpu_custom_call.1} parent=1 // pred_check
      _
    $region23: #{tpu_custom_call.1} parent=1 // pred_check_branch
      %64 = sbr.rel (0) target = $region25
    $region24: #{tpu_custom_call.1} parent=1 // pred_region
      %66 = vsyncadd [#allocation9], 0
      %s67 = sshll.u32 %s5, 4
      %s68 = int_to_ptr.hbm [resolvable:$true] %s67
      %s69 = sshll.u32 [#allocation8], 4
      %s70 = int_to_ptr.vmem [resolvable:$true] %s69
      %75 = dma.hbm_to_vmem [thread:$0]  %s68, 256, %s70, [#allocation9], 64, 64, 4
    $region25: #{tpu_custom_call.1} parent=1 // pred_fallthru
      _
    // Predicated region
    $region26: #{tpu_custom_call.1} parent=1 // pred_check
      _
    $region27: #{tpu_custom_call.1} parent=1 // pred_check_branch
      %77 = sbr.rel (0) target = $region29
    $region28: #{tpu_custom_call.1} parent=1 // pred_region
      _
    $region29: #{tpu_custom_call.1} parent=1 // pred_fallthru
      _
    // Predicated region
    $region30: #{tpu_custom_call.1} parent=1 // pred_check
      _
    $region31: #{tpu_custom_call.1} parent=1 // pred_check_branch
      %79 = sbr.rel (0) target = $region33
    $region32: #{tpu_custom_call.1} parent=1 // pred_region
      %81 = vsyncadd [#allocation9], 0
      %s82 = sshll.u32 %s7, 4
      %s83 = int_to_ptr.hbm [resolvable:$true] %s82
      %s84 = sshll.u32 [#allocation10], 4
      %s85 = int_to_ptr.vmem [resolvable:$true] %s84
      %90 = dma.hbm_to_vmem [thread:$0]  %s83, 256, %s85, [#allocation9], 64, 64, 4
    $region33: #{tpu_custom_call.1} parent=1 // pred_fallthru
      _
    // Predicated region
    $region34: #{tpu_custom_call.1} parent=1 // pred_check
      _
    $region35: #{tpu_custom_call.1} parent=1 // pred_check_branch
      %92 = sbr.rel (0) target = $region37
    $region36: #{tpu_custom_call.1} parent=1 // pred_region
      _
    $region37: #{tpu_custom_call.1} parent=1 // pred_fallthru
      _
    // Predicated region
    $region38: #{tpu_custom_call.1} parent=1 // pred_check
      _
    $region39: #{tpu_custom_call.1} parent=1 // pred_check_branch
      %94 = sbr.rel (0) target = $region41
    $region40: #{tpu_custom_call.1} parent=1 // pred_region
      %96 = vsyncadd [#allocation12], 0
      %s97 = sshll.u32 %s9, 4
      %s98 = int_to_ptr.hbm [resolvable:$true] %s97
      %s99 = sshll.u32 [#allocation11], 4
      %s100 = int_to_ptr.vmem [resolvable:$true] %s99
      %105 = dma.hbm_to_vmem [thread:$0]  %s98, 256, %s100, [#allocation12], 64, 64, 4
    $region41: #{tpu_custom_call.1} parent=1 // pred_fallthru
      _
    // Predicated region
    $region42: #{tpu_custom_call.1} parent=1 // pred_check
      _
    $region43: #{tpu_custom_call.1} parent=1 // pred_check_branch
      %107 = sbr.rel (0) target = $region45
    $region44: #{tpu_custom_call.1} parent=1 // pred_region
      %109 = vsyncadd [#allocation12], 0
      %s110 = sshll.u32 %s10, 4
      %s111 = int_to_ptr.hbm [resolvable:$true] %s110
      %s112 = sshll.u32 [#allocation13], 4
      %s113 = int_to_ptr.vmem [resolvable:$true] %s112
      %118 = dma.hbm_to_vmem [thread:$0]  %s111, 256, %s113, [#allocation12], 64, 64, 4
    $region45: #{tpu_custom_call.1} parent=1 // pred_fallthru
      _
    // Predicated region
    $region46: #{tpu_custom_call.1} parent=1 // pred_check
      _
    $region47: #{tpu_custom_call.1} parent=1 // pred_check_branch
      %120 = sbr.rel (0) target = $region49
    $region48: #{tpu_custom_call.1} parent=1 // pred_region
      _
    $region49: #{tpu_custom_call.1} parent=1 // pred_fallthru
      _
    // Predicated region
    $region50: #{tpu_custom_call.1} parent=1 // pred_check
      _
    $region51: #{tpu_custom_call.1} parent=1 // pred_check_branch
      %122 = sbr.rel (0) target = $region53
    $region52: #{tpu_custom_call.1} parent=1 // pred_region
      %124 = dma.done [#allocation3], 128
    $region53: #{tpu_custom_call.1} parent=1 // pred_fallthru
      _
    // Predicated region
    $region54: #{tpu_custom_call.1} parent=1 // pred_check
      _
    $region55: #{tpu_custom_call.1} parent=1 // pred_check_branch
      %126 = sbr.rel (0) target = $region57
    $region56: #{tpu_custom_call.1} parent=1 // pred_region
      %128 = dma.done [#allocation6], 16
    $region57: #{tpu_custom_call.1} parent=1 // pred_fallthru
      _
    // Predicated region
    $region58: #{tpu_custom_call.1} parent=1 // pred_check
      _
    $region59: #{tpu_custom_call.1} parent=1 // pred_check_branch
      %130 = sbr.rel (0) target = $region61
    $region60: #{tpu_custom_call.1} parent=1 // pred_region
      %132 = dma.done [#allocation6], 256
    $region61: #{tpu_custom_call.1} parent=1 // pred_fallthru
      _
    // Predicated region
    $region62: #{tpu_custom_call.1} parent=1 // pred_check
      _
    $region63: #{tpu_custom_call.1} parent=1 // pred_check_branch
      %134 = sbr.rel (0) target = $region65
    $region64: #{tpu_custom_call.1} parent=1 // pred_region
      %136 = dma.done [#allocation9], 256
    $region65: #{tpu_custom_call.1} parent=1 // pred_fallthru
      _
    // Predicated region
    $region66: #{tpu_custom_call.1} parent=1 // pred_check
      _
    $region67: #{tpu_custom_call.1} parent=1 // pred_check_branch
      %138 = sbr.rel (0) target = $region69
    $region68: #{tpu_custom_call.1} parent=1 // pred_region
      %140 = dma.done [#allocation9], 256
    $region69: #{tpu_custom_call.1} parent=1 // pred_fallthru
      _
    // Predicated region
    $region70: #{tpu_custom_call.1} parent=1 // pred_check
      _
    $region71: #{tpu_custom_call.1} parent=1 // pred_check_branch
      %142 = sbr.rel (0) target = $region73
    $region72: #{tpu_custom_call.1} parent=1 // pred_region
      %144 = dma.done [#allocation12], 256
    $region73: #{tpu_custom_call.1} parent=1 // pred_fallthru
      _
    // Predicated region
    $region74: #{tpu_custom_call.1} parent=1 // pred_check
      _
    $region75: #{tpu_custom_call.1} parent=1 // pred_check_branch
      %146 = sbr.rel (0) target = $region77
    $region76: #{tpu_custom_call.1} parent=1 // pred_region
      %148 = dma.done [#allocation12], 256
    $region77: #{tpu_custom_call.1} parent=1 // pred_fallthru
      _
    %v150 = vld [vmem:[#allocation2] sm:$0xf]
    %v151 = vld [vmem:[#allocation2 + $0x4] sm:$0xf]
    %v152 = vunpack.c.l.bf16 %v150
    %v153 = vunpack.c.l.bf16 %v151
    %vm154 = vcmask 261120
    %v155 = vsel %vm154, %v152, 0.0
    %156 = vadd.xlane.f32.xlu0 %v155
    %v157 = vpop.xlane.xlu0 %156
    %v158 = vsel %vm154, %v153, 0.0
    %159 = vadd.xlane.f32.xlu0 %v158
    %v160 = vpop.xlane.xlu0 %159
    %v161 = vrcp.pop 32.0
    %v162 = vmul.f32 32.0, %v161
    %v163 = vsub.f32 1.0, %v162
    %v164 = vmul.f32 %v161, %v163
    %v165 = vadd.f32 %v161, %v164
    %vm166 = vweird.f32 %v161
    %v167 = vsel %vm166, %v161, %v165
    %v168 = vmul.f32 %v157, %v167
    %v169 = vmul.f32 %v160, %v167
    %v170 = vsub.f32 %v152, %v168
    %v171 = vsub.f32 %v153, %v169
    %v172 = vmul.f32 %v170, %v170
    %v173 = vmul.f32 %v171, %v171
    %v174 = vsel %vm154, %v172, 0.0
    %175 = vadd.xlane.f32.xlu0 %v174
    %v176 = vpop.xlane.xlu0 %175
    %v177 = vsel %vm154, %v173, 0.0
    %178 = vadd.xlane.f32.xlu0 %v177
    %v179 = vpop.xlane.xlu0 %178
    %v180 = vmul.f32 %v176, %v167
    %v181 = vmul.f32 %v179, %v167
    %v182 = vadd.f32 %v180, 1e-05
    %v183 = vadd.f32 %v181, 1e-05
    %v184 = vrsqrt.pop %v182
    %v185 = vmul.f32 %v184, %v182
    %v186 = vmul.f32 %v185, %v184
    %v187 = vmul.f32 0.5, %v186
    %v188 = vsub.f32 1.5, %v187
    %v189 = vmul.f32 %v184, %v188
    %vm190 = vweird.f32 %v182
    %vm191 = vweird.f32 %v184
    %vm192 = vmor %vm190, %vm191
    %v193 = vsel %vm192, %v184, %v189
    %v194 = vrsqrt.pop %v183
    %v195 = vmul.f32 %v194, %v183
    %v196 = vmul.f32 %v195, %v194
    %v197 = vmul.f32 0.5, %v196
    %v198 = vsub.f32 1.5, %v197
    %v199 = vmul.f32 %v194, %v198
    %vm200 = vweird.f32 %v183
    %vm201 = vweird.f32 %v194
    %vm202 = vmor %vm200, %vm201
    %v203 = vsel %vm202, %v194, %v199
    %v204 = vmul.f32 %v170, %v193
    %v205 = vmul.f32 %v171, %v203
    %v206 = vld [vmem:[#allocation5] sm:$0x1]
    %v208 = vperm.slane %v206, 0
    %v210 = vmul.f32 %v204, %v208
    %v211 = vmul.f32 %v205, %v208
    %v212 = vld [vmem:[%s2] sm:$0x1]
    %v214 = vperm.slane %v212, 0
    %v216 = vadd.f32 %v210, %v214
    %v217 = vadd.f32 %v211, %v214
    %v218 = vpack.c.bf16 %v217, %v216
    %v219 = vld [vmem:[#allocation7] sm:$0xf]
    %v220 = vld [vmem:[#allocation7 + $0x4] sm:$0xf]
    %v221 = vld [vmem:[#allocation7 + $0x8] sm:$0xf]
    %v222 = vld [vmem:[#allocation7 + $0xc] sm:$0xf]
    %v223 = vld [vmem:[%s4] sm:$0x1]
    %v225 = vperm.slane %v223, 0
    %v231 = vunpack.c.l.b16 %v219
    %v232 = vunpack.c.l.b16 %v220
    %v233 = vunpack.c.l.b16 %v221
    %v234 = vunpack.c.l.b16 %v222
    %v235 = vpack.c.b16 %v232, %v231
    %v236 = vpack.c.b16 %v234, %v233
    %v240 = vsel %vm154, %v218, 0
    %242 = vmatpush.bf16.msra.mxu0 0
    %243 = vmatpush.bf16.msra.mxu0 0
    %244 = vmatpush.bf16.msra.mxu0 0
    %245 = vmatpush.bf16.msra.mxu0 0
    %246 = vmatpush.bf16.msra.mxu0 0
    %247 = vmatpush.bf16.msra.mxu0 0
    %248 = vmatpush.bf16.msra.mxu0 %v236
    %249 = vmatpush.bf16.msra.mxu0 %v235
    %250 = vmatmul.bf16.gmra.mxu0 %v240
    %v251 = vpop.f32.mrf.mxu0
    %v252 = vadd.f32 %v225, %v251
    %v253 = vpop.f32.mrf.mxu0
    %v254 = vadd.f32 %v225, %v253
    %255 = vdwg.mxu0
    %v256 = vmul.f32 %v252, 0.5
    %v257 = vmul.f32 %v254, 0.5
    %v258 = vmul.f32 %v252, 0.044715
    %v259 = vmul.f32 %v254, 0.044715
    %v260 = vmul.f32 %v258, %v252
    %v261 = vmul.f32 %v259, %v254
    %v262 = vmul.f32 %v260, %v252
    %v263 = vmul.f32 %v261, %v254
    %v264 = vadd.f32 %v252, %v262
    %v265 = vadd.f32 %v254, %v263
    %v266 = vmul.f32 %v264, 0.7978846
    %v267 = vmul.f32 %v265, 0.7978846
    %v268 = vtanh.pop %v266
    %v269 = vtanh.pop %v267
    %v270 = vadd.f32 %v268, 1.0
    %v271 = vadd.f32 %v269, 1.0
    %v272 = vmul.f32 %v256, %v270
    %v273 = vmul.f32 %v257, %v271
    %v274 = vpack.c.bf16 %v273, %v272
    %v275 = vld [vmem:[#allocation8] sm:$0xf]
    %v276 = vld [vmem:[#allocation8 + $0x4] sm:$0xf]
    %v277 = vld [vmem:[#allocation8 + $0x8] sm:$0xf]
    %v278 = vld [vmem:[#allocation8 + $0xc] sm:$0xf]
    %v279 = vld [vmem:[%s6] sm:$0x1]
    %v281 = vperm.slane %v279, 0
    %v287 = vunpack.c.l.b16 %v275
    %v288 = vunpack.c.l.b16 %v276
    %v289 = vunpack.c.l.b16 %v277
    %v290 = vunpack.c.l.b16 %v278
    %v291 = vpack.c.b16 %v288, %v287
    %v292 = vpack.c.b16 %v290, %v289
    %v296 = vsel %vm154, %v274, 0
    %298 = vmatpush.bf16.msra.mxu0 0
    %299 = vmatpush.bf16.msra.mxu0 0
    %300 = vmatpush.bf16.msra.mxu0 0
    %301 = vmatpush.bf16.msra.mxu0 0
    %302 = vmatpush.bf16.msra.mxu0 0
    %303 = vmatpush.bf16.msra.mxu0 0
    %304 = vmatpush.bf16.msra.mxu0 %v292
    %305 = vmatpush.bf16.msra.mxu0 %v291
    %306 = vmatmul.bf16.gmra.mxu0 %v296
    %v307 = vpop.f32.mrf.mxu0
    %v308 = vadd.f32 %v281, %v307
    %v309 = vpop.f32.mrf.mxu0
    %v310 = vadd.f32 %v281, %v309
    %311 = vdwg.mxu0
    %v312 = vmul.f32 %v308, 0.5
    %v313 = vmul.f32 %v310, 0.5
    %v314 = vmul.f32 %v308, 0.044715
    %v315 = vmul.f32 %v310, 0.044715
    %v316 = vmul.f32 %v314, %v308
    %v317 = vmul.f32 %v315, %v310
    %v318 = vmul.f32 %v316, %v308
    %v319 = vmul.f32 %v317, %v310
    %v320 = vadd.f32 %v308, %v318
    %v321 = vadd.f32 %v310, %v319
    %v322 = vmul.f32 %v320, 0.7978846
    %v323 = vmul.f32 %v321, 0.7978846
    %v324 = vtanh.pop %v322
    %v325 = vtanh.pop %v323
    %v326 = vadd.f32 %v324, 1.0
    %v327 = vadd.f32 %v325, 1.0
    %v328 = vmul.f32 %v312, %v326
    %v329 = vmul.f32 %v313, %v327
    %v330 = vld [vmem:[#allocation10] sm:$0xf]
    %v331 = vld [vmem:[#allocation10 + $0x4] sm:$0xf]
    %v332 = vld [vmem:[#allocation10 + $0x8] sm:$0xf]
    %v333 = vld [vmem:[#allocation10 + $0xc] sm:$0xf]
    %v334 = vld [vmem:[%s8] sm:$0x1]
    %v336 = vperm.slane %v334, 0
    %339 = vrot.lane.b32.xlu0 %v274, 96
    %v340 = vpop.permute.xlu0 %339
    %v345 = vunpack.c.l.b16 %v330
    %v346 = vunpack.c.l.b16 %v331
    %v347 = vunpack.c.l.b16 %v332
    %v348 = vunpack.c.l.b16 %v333
    %v349 = vpack.c.b16 %v346, %v345
    %v350 = vpack.c.b16 %v348, %v347
    %v354 = vsel %vm154, %v340, 0
    %356 = vmatpush.bf16.msra.mxu0 0
    %357 = vmatpush.bf16.msra.mxu0 0
    %358 = vmatpush.bf16.msra.mxu0 0
    %359 = vmatpush.bf16.msra.mxu0 0
    %360 = vmatpush.bf16.msra.mxu0 0
    %361 = vmatpush.bf16.msra.mxu0 0
    %362 = vmatpush.bf16.msra.mxu0 %v350
    %363 = vmatpush.bf16.msra.mxu0 %v349
    %364 = vmatmul.bf16.gmra.mxu0 %v354
    %v365 = vpop.f32.mrf.mxu0
    %v366 = vadd.f32 %v336, %v365
    %v367 = vpop.f32.mrf.mxu0
    %v368 = vadd.f32 %v336, %v367
    %369 = vdwg.mxu0
    %v370 = vmul.f32 %v366, 0.5
    %v371 = vmul.f32 %v368, 0.5
    %v372 = vmul.f32 %v366, 0.044715
    %v373 = vmul.f32 %v368, 0.044715
    %v374 = vmul.f32 %v372, %v366
    %v375 = vmul.f32 %v373, %v368
    %v376 = vmul.f32 %v374, %v366
    %v377 = vmul.f32 %v375, %v368
    %v378 = vadd.f32 %v366, %v376
    %v379 = vadd.f32 %v368, %v377
    %v380 = vmul.f32 %v378, 0.7978846
    %v381 = vmul.f32 %v379, 0.7978846
    %v382 = vtanh.pop %v380
    %v383 = vtanh.pop %v381
    %v384 = vadd.f32 %v382, 1.0
    %v385 = vadd.f32 %v383, 1.0
    %v386 = vmul.f32 %v370, %v384
    %v387 = vmul.f32 %v371, %v385
    %v388 = vpack.c.bf16 %v329, %v328
    %v389 = vld [vmem:[#allocation11] sm:$0xf]
    %v390 = vld [vmem:[#allocation11 + $0x4] sm:$0xf]
    %v391 = vld [vmem:[#allocation11 + $0x8] sm:$0xf]
    %v392 = vld [vmem:[#allocation11 + $0xc] sm:$0xf]
    %v393 = vpack.c.bf16 %v387, %v386
    %v394 = vld [vmem:[#allocation13] sm:$0xf]
    %v395 = vld [vmem:[#allocation13 + $0x4] sm:$0xf]
    %v396 = vld [vmem:[#allocation13 + $0x8] sm:$0xf]
    %v397 = vld [vmem:[#allocation13 + $0xc] sm:$0xf]
    %v402 = vunpack.c.l.b16 %v394
    %v403 = vunpack.c.l.b16 %v395
    %v404 = vunpack.c.l.b16 %v396
    %v405 = vunpack.c.l.b16 %v397
    %v406 = vpack.c.b16 %v403, %v402
    %v407 = vpack.c.b16 %v405, %v404
    %v411 = vsel %vm154, %v393, 0
    %413 = vmatpush.bf16.msra.mxu0 0
    %414 = vmatpush.bf16.msra.mxu0 0
    %415 = vmatpush.bf16.msra.mxu0 0
    %416 = vmatpush.bf16.msra.mxu0 0
    %417 = vmatpush.bf16.msra.mxu0 0
    %418 = vmatpush.bf16.msra.mxu0 0
    %419 = vmatpush.bf16.msra.mxu0 %v407
    %420 = vmatpush.bf16.msra.mxu0 %v406
    %421 = vmatmul.bf16.gmra.mxu0 %v411
    %v422 = vpop.f32.mrf.mxu0
    %v423 = vadd.f32 0.0, %v422
    %v424 = vpop.f32.mrf.mxu0
    %v425 = vadd.f32 0.0, %v424
    %426 = vdwg.mxu0
    %v431 = vunpack.c.l.b16 %v389
    %v432 = vunpack.c.l.b16 %v390
    %v433 = vunpack.c.l.b16 %v391
    %v434 = vunpack.c.l.b16 %v392
    %v435 = vpack.c.b16 %v432, %v431
    %v436 = vpack.c.b16 %v434, %v433
    %v440 = vsel %vm154, %v388, 0
    %442 = vmatpush.bf16.msra.mxu0 0
    %443 = vmatpush.bf16.msra.mxu0 0
    %444 = vmatpush.bf16.msra.mxu0 0
    %445 = vmatpush.bf16.msra.mxu0 0
    %446 = vmatpush.bf16.msra.mxu0 0
    %447 = vmatpush.bf16.msra.mxu0 0
    %448 = vmatpush.bf16.msra.mxu0 %v436
    %449 = vmatpush.bf16.msra.mxu0 %v435
    %450 = vmatmul.bf16.gmra.mxu0 %v440
    %v451 = vpop.f32.mrf.mxu0
    %v452 = vadd.f32 %v423, %v451
    %v453 = vpop.f32.mrf.mxu0
    %v454 = vadd.f32 %v425, %v453
    %455 = vdwg.mxu0
    %v456 = vld [vmem:[%s11] sm:$0x1]
    %v458 = vperm.slane %v456, 0
    %v460 = vadd.f32 %v452, %v458
    %v461 = vadd.f32 %v454, %v458
    %v462 = vlaneseq
    %v463 = vand.u32 %v462, 127
    %vm464 = vcmp.lt.s32.totalorder %v463, 4
    %v465 = vxor.u32 %v460, 2147483648
    %v466 = vxor.u32 %v461, 2147483648
    %v467 = vmul.f32 %v465, 1.442695
    %v468 = vpow.pop %v467
    %v469 = vmul.f32 %v466, 1.442695
    %v470 = vpow.pop %v469
    %v471 = vadd.f32 %v468, 1.0
    %v472 = vadd.f32 %v470, 1.0
    %v473 = vrcp.pop %v471
    %v474 = vmul.f32 %v471, %v473
    %v475 = vsub.f32 1.0, %v474
    %v476 = vmul.f32 %v473, %v475
    %v477 = vadd.f32 %v473, %v476
    %vm478 = vweird.f32 %v471
    %vm479 = vweird.f32 %v473
    %vm480 = vmor %vm478, %vm479
    %v481 = vsel %vm480, %v473, %v477
    %v482 = vand.u32 2147483647, %v471
    %vm483 = vcmp.eq.f32.partialorder %v482, 8.507059e+37
    %v484 = vand.u32 %v471, 2147483648
    %v485 = vor.u32 1.1754944e-38, %v484
    %v486 = vsel %vm483, %v485, %v481
    %v487 = vmul.f32 1.0, %v486
    %v488 = vrcp.pop %v472
    %v489 = vmul.f32 %v472, %v488
    %v490 = vsub.f32 1.0, %v489
    %v491 = vmul.f32 %v488, %v490
    %v492 = vadd.f32 %v488, %v491
    %vm493 = vweird.f32 %v472
    %vm494 = vweird.f32 %v488
    %vm495 = vmor %vm493, %vm494
    %v496 = vsel %vm495, %v488, %v492
    %v497 = vand.u32 2147483647, %v472
    %vm498 = vcmp.eq.f32.partialorder %v497, 8.507059e+37
    %v499 = vand.u32 %v472, 2147483648
    %v500 = vor.u32 1.1754944e-38, %v499
    %v501 = vsel %vm498, %v500, %v496
    %v502 = vmul.f32 1.0, %v501
    %v503 = vsel %vm464, %v487, %v460
    %v504 = vsel %vm464, %v502, %v461
    %505 = vst [vmem:[#allocation14] sm:$0xff] %v503
    %506 = vst [vmem:[#allocation14 + $0x8] sm:$0xff] %v504
    // Predicated region
    $region78: #{tpu_custom_call.1} parent=1 // pred_check
      _
    $region79: #{tpu_custom_call.1} parent=1 // pred_check_branch
      %508 = sbr.rel (0) target = $region81
    $region80: #{tpu_custom_call.1} parent=1 // pred_region
      %510 = vsyncadd [#allocation4], 0
      %s511 = sshll.u32 [#allocation14], 4
      %s512 = int_to_ptr.vmem [resolvable:$true] %s511
      %s513 = sshll.u32 %s12, 4
      %s514 = int_to_ptr.hbm [resolvable:$true] %s513
      %519 = dma.vmem_to_hbm [thread:$0]  %s512, 256, %s514, [#allocation4], 128, 128, 8
    $region81: #{tpu_custom_call.1} parent=1 // pred_fallthru
      _
    // Predicated region
    $region82: #{tpu_custom_call.1} parent=1 // pred_check
      _
    $region83: #{tpu_custom_call.1} parent=1 // pred_check_branch
      %521 = sbr.rel (0) target = $region85
    $region84: #{tpu_custom_call.1} parent=1 // pred_region
      %523 = dma.done [#allocation4], 256
    $region85: #{tpu_custom_call.1} parent=1 // pred_fallthru
      _
    %524 = vsyncpa [#allocation3], 1
    %525 = vsyncpa [#allocation6], 1
    %526 = vsyncpa [#allocation9], 1
    %527 = vsyncpa [#allocation12], 1
    %528 = vsyncpa [#allocation4], 1

</llo_original>
